<compile_context>
chip_gen: v5e
topology: v5e:2x2
jax: 0.10.0
libtpu: 0.0.40
codegen_flags: <defaults>
</compile_context>

<pallas_src>
import math

import jax
import jax.numpy as jnp
from jax.experimental import pallas as pl
from jax.experimental.pallas import tpu as pltpu


def _cve_matmul_kernel(a_ref, w_ref, o_ref):
    """One grid step: (tm, 4k) @ (4k, kD) -> (tm, kD) output slab."""
    # HIGHEST precision keeps the f32 matmul numerically equivalent to the
    # reference elementwise formulation (K is tiny, so the extra MXU passes
    # are free for this HBM-write-bound kernel).
    o_ref[...] = jnp.dot(
        a_ref[...], w_ref[...],
        preferred_element_type=jnp.float32,
        precision=jax.lax.Precision.HIGHEST,
    ).astype(o_ref.dtype)


def init_params(key, token_dim):
    """Deterministic synthetic parameters matching nn.Linear(1, token_dim) shapes."""
    k1, k2, k3, k4 = jax.random.split(key, 4)
    return {
        "w_time": jax.random.normal(k1, (token_dim, 1), jnp.float32) * 0.1,
        "b_time": jax.random.normal(k2, (token_dim,), jnp.float32) * 0.1,
        "w_val":  jax.random.normal(k3, (token_dim, 1), jnp.float32) * 0.1,
        "b_val":  jax.random.normal(k4, (token_dim,), jnp.float32) * 0.1,
    }
    # TODO(synk): TextCodeEmbedder's BERT + Linear are omitted — its forward
    # output is torch.zeros_like(...), so it never affects the result.


def _round_up(x, m):
    return (x + m - 1) // m * m


def text_code_encoder_forward(batch, params, *, tile_m=1024, out_dtype=jnp.float32):
    """Pallas forward. `out_dtype=jnp.bfloat16` halves HBM write traffic if the
    downstream consumer tolerates it (compute stays f32 in-kernel)."""
    t = batch["time_delta_days"].astype(jnp.float32)      # [B, S]
    nv = batch["numeric_value"].astype(jnp.float32)        # [B, S]
    sm = batch["static_mask"].astype(jnp.float32)          # [B, S]
    nvm = batch["numeric_value_mask"].astype(jnp.float32)  # [B, S]

    B, S = t.shape
    D = params["w_time"].shape[0]
    N = B * S

    # Packed activations A[n] = [t*(1-sm), (1-sm), nv*nvm, nvm]  -> (N, 4).
    # (Layout plumbing over tiny data: 16 bytes/row vs 4*D bytes/row of output.)
    m1 = 1.0 - sm
    A = jnp.stack([t * m1, m1, nv * nvm, nvm], axis=-1).reshape(N, 4)

    # Packed parameters: rows = [Wt, bt, Wv, bv]  -> (4, D).
    W = jnp.stack(
        [params["w_time"].reshape(D), params["b_time"].reshape(D),
         params["w_val"].reshape(D), params["b_val"].reshape(D)], axis=0)

    # Lane-dense packing: fold k consecutive rows into one output row of width
    # k*D (a multiple of 128).  Free to undo: (N/k, k*D) row-major == (B, S, D).
    k = 128 // math.gcd(D, 128)
    if N % k != 0:
        # Fallback: correct for any N, just not lane-dense when D < 128.
        k = 1
    M = N // k
    K4, KD = 4 * k, k * D
    A_p = A.reshape(M, K4)
    W_p = W if k == 1 else jnp.kron(jnp.eye(k, dtype=W.dtype), W)  # block-diag (4k, kD)

    # Row-tile size: big tiles to amortize per-step overhead, but keep >= 2 grid
    # steps when possible so both v7x TensorCores get work.
    half = _round_up(max((M + 1) // 2, 1), 8)
    tm = min(tile_m, half)
    if tm >= M:
        tm = M                      # tiny problem: one full-array block
    grid = (pl.cdiv(M, tm),)

    # Rough double-buffered VMEM budget (lanes pad to 128) -> explicit scoped limit.
    lane = lambda c: _round_up(c, 128)
    est = (2 * tm * lane(K4) * 4          # packed activations
           + 2 * tm * lane(KD) * 4        # output slab
           + 2 * _round_up(K4, 8) * lane(KD) * 4)  # weights (tiny, revisited block)
    vmem_limit = int(min(max(2 * est, 32 << 20), 64 << 20))

    out = pl.pallas_call(
        _cve_matmul_kernel,
        out_shape=jax.ShapeDtypeStruct((M, KD), out_dtype),
        grid_spec=pl.GridSpec(
            grid=grid,
            in_specs=[
                pl.BlockSpec((tm, K4), lambda i: (i, 0)),   # packed scalars
                pl.BlockSpec((K4, KD), lambda i: (0, 0)),   # packed params (resident)
            ],
            out_specs=pl.BlockSpec((tm, KD), lambda i: (i, 0)),
        ),
        compiler_params=pltpu.CompilerParams(
            dimension_semantics=("parallel",),
            vmem_limit_bytes=vmem_limit,
        ),
    )(A_p, W_p)

    embedding = out.reshape(B, S, D)   # free reshape: same row-major bytes

    new_batch = dict(batch)
    new_batch["input_encoder_mask"] = batch["mask"]
    new_batch["input_encoder_tokens"] = embedding
    return new_batch


def _reference_forward(batch, params):
    """Pure-JAX reference mirroring the PyTorch semantics exactly."""
    t = batch["time_delta_days"].astype(jnp.float32)[..., None]
    nv = batch["numeric_value"].astype(jnp.float32)[..., None]
    sm = batch["static_mask"].astype(jnp.float32)[..., None]
    nvm = batch["numeric_value_mask"].astype(jnp.float32)[..., None]
    wt = params["w_time"].reshape(-1)
    bt = params["b_time"]
    wv = params["w_val"].reshape(-1)
    bv = params["b_val"]
    time_emb = (t * wt + bt) * (1.0 - sm)
    val_emb = (nv * wv + bv) * nvm
    code_emb = jnp.zeros_like(time_emb)
    return time_emb + code_emb + val_emb


def _make_batch(key, B, S):
    k1, k2, k3, k4, k5, k6 = jax.random.split(key, 6)
    return {
        "static_mask": jax.random.bernoulli(k1, 0.3, (B, S)),
        "code": jax.random.randint(k2, (B, S), 1, 11),
        "mask": jax.random.bernoulli(k3, 0.9, (B, S)),
        "numeric_value": jax.random.normal(k4, (B, S), jnp.float32),
        "time_delta_days": jax.random.uniform(k5, (B, S), jnp.float32, 0.0, 30.0),
        "numeric_value_mask": jax.random.bernoulli(k6, 0.5, (B, S)),
    }


if __name__ == "__main__":
    key = jax.random.PRNGKey(0)

    # (B, S, D): primary small case + a few shapes exercising the packed
    # (D<128) path, the lane-native (D multiple of 128) path, and a ragged
    # edge block.
    configs = [
        (2, 8, 32),      # primary: k=4 packing, single block
        (2, 64, 32),     # k=4 packing, multi-step grid
        (3, 24, 32),     # k=4 packing, partial edge block
        (4, 128, 256),   # k=1, lane-native D, multi-step grid
    ]

    for idx, (B, S, D) in enumerate(configs):
        kcfg = jax.random.fold_in(key, idx)
        kp, kb = jax.random.split(kcfg)
        params = init_params(kp, D)
        batch = _make_batch(kb, B, S)

        out_batch = text_code_encoder_forward(batch, params)
        emb = jax.block_until_ready(out_batch["input_encoder_tokens"])
        ref = _reference_forward(batch, params)

        assert emb.shape == (B, S, D), (emb.shape, (B, S, D))
        assert bool(jnp.isfinite(emb).all()), "Embedding is not finite"
        assert jnp.allclose(emb, ref, atol=1e-5, rtol=1e-5), \
            f"Mismatch vs reference for config {(B, S, D)}"

    print("KERNEL_OK")
</pallas_src>

<mosaic_0001>
module attributes {stable_mosaic.version = 11 : i64} {
  func.func @_cve_matmul_kernel(%arg0: i32, %arg1: memref<4x16xf32, #tpu.memory_space<vmem>>, %arg2: memref<16x128xf32, #tpu.memory_space<vmem>>, %arg3: memref<4x128xf32, #tpu.memory_space<vmem>>) attributes {dimension_semantics = [#tpu.dimension_semantics<parallel>], iteration_bounds = array<i64: 1>, scalar_prefetch = 0 : i64, scratch_operands = 0 : i64, tpu.core_type = #tpu.core_type<tc>, window_params = [{transform_indices = @transform_0, window_bounds = array<i64: 4, 16>}, {pipeline_mode = #tpu.pipeline_mode<synchronous>, transform_indices = @transform_1, window_bounds = array<i64: 16, 128>}, {transform_indices = @transform_2, window_bounds = array<i64: 4, 128>}]} {
    %c0 = arith.constant 0 : index
    %c0_0 = arith.constant 0 : index
    %0 = vector.load %arg1[%c0, %c0_0] : memref<4x16xf32, #tpu.memory_space<vmem>>, vector<4x16xf32>
    %c0_1 = arith.constant 0 : index
    %c0_2 = arith.constant 0 : index
    %1 = vector.load %arg2[%c0_1, %c0_2] : memref<16x128xf32, #tpu.memory_space<vmem>>, vector<16x128xf32>
    %cst = arith.constant dense<0.000000e+00> : vector<4x128xf32>
    %2 = tpu.matmul %0, %1, %cst {dimension_numbers = #tpu.dot_dimension_numbers<[1], [0], [0], [1], [0, 0, 1, 1], [], []>, precision = #tpu.contract_precision<fp32>} : vector<4x16xf32>, vector<16x128xf32>, vector<4x128xf32> -> vector<4x128xf32>
    %c0_3 = arith.constant 0 : index
    %c0_4 = arith.constant 0 : index
    %3 = vector.load %arg3[%c0_3, %c0_4] : memref<4x128xf32, #tpu.memory_space<vmem>>, vector<4x128xf32>
    tpu.vector_store %arg3[%c0_3, %c0_4], %2 {strides = array<i32>} : memref<4x128xf32, #tpu.memory_space<vmem>>, vector<4x128xf32>,
    return
  }
  func.func @transform_0(%arg0: i32) -> (i32, i32) {
    %c0_i32 = arith.constant 0 : i32
    %c0_i32_0 = arith.constant 0 : i32
    return %arg0, %c0_i32 : i32, i32
  }
  func.func @transform_1(%arg0: i32) -> (i32, i32) {
    %c0_i32 = arith.constant 0 : i32
    %c0_i32_0 = arith.constant 0 : i32
    %c0_i32_1 = arith.constant 0 : i32
    return %c0_i32, %c0_i32_0 : i32, i32
  }
  func.func @transform_2(%arg0: i32) -> (i32, i32) {
    %c0_i32 = arith.constant 0 : i32
    %c0_i32_0 = arith.constant 0 : i32
    return %arg0, %c0_i32 : i32, i32
  }
}

</mosaic_0001>

<llo_original>
// kernel: tpu_custom_call.1
$region0: #{tpu_custom_call.1}
  #allocation0 [shape = 'u32[]', space=smem, size = 0x4, offset = 0x4, fixed_abs, tag = 'smem constant byte address 0x4 - core index']
  #allocation1 [shape = 'u32[72,128]{1,0:T(1,128)}', space=vmem, size = 0x9000, scoped, tag = 'internal scratch']
  %s0 = inlined_call_operand.hbm [shape: f32[4,16], index: 0, kind: input, shape index: {}]
  %s1 = inlined_call_operand.hbm [shape: f32[16,128], index: 1, kind: input, shape index: {}]
  %s2 = inlined_call_operand.hbm [shape: f32[4,128], index: 2, kind: output, shape index: {}]
  %s3 = sld [smem:[#allocation0]]
  $region26: #{tpu_custom_call.1} parent=0
    _
  %s5 = ssub.s32 1, %s3
  %s6 = scalar_select 0, %s5, %s3
  $region1: #{tpu_custom_call.1} parent=0
    #allocation2 [shape = 'u8[2048]{0}', space=vmem, size = 0x800, scoped, tag = 'input window, operand 0, single buffered']
    #allocation3 [shape = 's32[1]{0}', space=sflag, size = 0x4, scoped, tag = 'scoped memory for tpu_custom_call.1']
    #allocation4 [shape = 's32[1]{0}', space=sflag, size = 0x4, scoped, tag = 'scoped memory for tpu_custom_call.1']
    #allocation5 [shape = 'u8[8192]{0}', space=vmem, size = 0x2000, scoped, tag = 'input window, operand 1, single buffered']
    #allocation6 [shape = 's32[1]{0}', space=sflag, size = 0x4, scoped, tag = 'scoped memory for tpu_custom_call.1']
    #allocation7 [shape = 'u8[2048]{0}', space=vmem, size = 0x800, scoped, tag = 'output window, operand 0, single buffered']
    %7 = vsyncpa [#allocation3], 0
    %8 = vsyncpa [#allocation6], 0
    %9 = vsyncpa [#allocation4], 0
    // Predicated region
    $region2: #{tpu_custom_call.1} parent=1 // pred_check
      _
    $region3: #{tpu_custom_call.1} parent=1 // pred_check_branch
      %11 = sbr.rel (0) target = $region5
    $region4: #{tpu_custom_call.1} parent=1 // pred_region
      %13 = vsyncadd [#allocation3], 0
      %s15 = sshll.u32 %s0, 4
      %s16 = int_to_ptr.hbm [resolvable:$true] %s15
      %s17 = sshll.u32 [#allocation2], 4
      %s18 = int_to_ptr.vmem [resolvable:$true] %s17
      %20 = dma.hbm_to_vmem [thread:$0]  %s16, 64, %s18, [#allocation3]
    $region5: #{tpu_custom_call.1} parent=1 // pred_fallthru
      _
    // Predicated region
    $region6: #{tpu_custom_call.1} parent=1 // pred_check
      _
    $region7: #{tpu_custom_call.1} parent=1 // pred_check_branch
      %22 = sbr.rel (0) target = $region9
    $region8: #{tpu_custom_call.1} parent=1 // pred_region
      %24 = vsyncadd [#allocation6], 0
      %s25 = sshll.u32 %s1, 4
      %s26 = int_to_ptr.hbm [resolvable:$true] %s25
      %s27 = sshll.u32 [#allocation5], 4
      %s28 = int_to_ptr.vmem [resolvable:$true] %s27
      %33 = dma.hbm_to_vmem [thread:$0]  %s26, 256, %s28, [#allocation6], 128, 128, 8
    $region9: #{tpu_custom_call.1} parent=1 // pred_fallthru
      _
    // Predicated region
    $region10: #{tpu_custom_call.1} parent=1 // pred_check
      _
    $region11: #{tpu_custom_call.1} parent=1 // pred_check_branch
      %35 = sbr.rel (0) target = $region13
    $region12: #{tpu_custom_call.1} parent=1 // pred_region
      %37 = dma.done [#allocation3], 64
    $region13: #{tpu_custom_call.1} parent=1 // pred_fallthru
      _
    // Predicated region
    $region14: #{tpu_custom_call.1} parent=1 // pred_check
      _
    $region15: #{tpu_custom_call.1} parent=1 // pred_check_branch
      %39 = sbr.rel (0) target = $region17
    $region16: #{tpu_custom_call.1} parent=1 // pred_region
      %41 = dma.done [#allocation6], 256
    $region17: #{tpu_custom_call.1} parent=1 // pred_fallthru
      _
    %v42 = vld [vmem:[#allocation2] sm:$0xf]
    %v43 = vld [vmem:[#allocation5] sm:$0xff]
    %v44 = vld [vmem:[#allocation5 + $0x8] sm:$0xff]
    %vm45 = vcmask 130048
    %v47 = vsel %vm45, %v42, 0
    %49 = vmatpush.msra.mxu0 0.0
    %50 = vmatpush.msra.mxu0 0.0
    %51 = vmatpush.msra.mxu0 0.0
    %52 = vmatpush.msra.mxu0 0.0
    %53 = vmatpush.msra.mxu0 0.0
    %54 = vmatpush.msra.mxu0 0.0
    %55 = vmatpush.msra.mxu0 0.0
    %56 = vmatpush.msra.mxu0 0.0
    %57 = vmatpush.msra.mxu0 0.0
    %58 = vmatpush.msra.mxu0 0.0
    %59 = vmatpush.msra.mxu0 0.0
    %60 = vmatpush.msra.mxu0 0.0
    %61 = vmatpush.msra.mxu0 0.0
    %62 = vmatpush.msra.mxu0 0.0
    %v63 = vand.u32 %v44, 4294901760
    %64 = vmatpush.msra.mxu0 %v63
    %v65 = vand.u32 %v43, 4294901760
    %66 = vmatpush.msra.mxu0 %v65
    %v67 = vand.u32 %v47, 4294901760
    %v68 = vsub.f32 %v47, %v67
    %v69 = vand.u32 %v68, 4294901760
    %v70 = vsub.f32 %v68, %v69
    %v71 = vand.u32 %v70, 4294901760
    %72 = vmatmul.f32.gmra.mxu0 %v71
    %v73 = vpop.f32.mrf.mxu0
    %v74 = vadd.f32 0.0, %v73
    %75 = vdwg.mxu0
    %76 = vmatpush.msra.mxu0 0.0
    %77 = vmatpush.msra.mxu0 0.0
    %78 = vmatpush.msra.mxu0 0.0
    %79 = vmatpush.msra.mxu0 0.0
    %80 = vmatpush.msra.mxu0 0.0
    %81 = vmatpush.msra.mxu0 0.0
    %82 = vmatpush.msra.mxu0 0.0
    %83 = vmatpush.msra.mxu0 0.0
    %84 = vmatpush.msra.mxu0 0.0
    %85 = vmatpush.msra.mxu0 0.0
    %86 = vmatpush.msra.mxu0 0.0
    %87 = vmatpush.msra.mxu0 0.0
    %88 = vmatpush.msra.mxu0 0.0
    %89 = vmatpush.msra.mxu0 0.0
    %v90 = vand.u32 %v44, 4294901760
    %v91 = vsub.f32 %v44, %v90
    %v92 = vand.u32 %v91, 4294901760
    %v93 = vsub.f32 %v91, %v92
    %v94 = vand.u32 %v93, 4294901760
    %95 = vmatpush.msra.mxu0 %v94
    %v96 = vand.u32 %v43, 4294901760
    %v97 = vsub.f32 %v43, %v96
    %v98 = vand.u32 %v97, 4294901760
    %v99 = vsub.f32 %v97, %v98
    %v100 = vand.u32 %v99, 4294901760
    %101 = vmatpush.msra.mxu0 %v100
    %v102 = vand.u32 %v47, 4294901760
    %103 = vmatmul.f32.gmra.mxu0 %v102
    %v104 = vpop.f32.mrf.mxu0
    %v105 = vadd.f32 %v74, %v104
    %106 = vdwg.mxu0
    %107 = vmatpush.msra.mxu0 0.0
    %108 = vmatpush.msra.mxu0 0.0
    %109 = vmatpush.msra.mxu0 0.0
    %110 = vmatpush.msra.mxu0 0.0
    %111 = vmatpush.msra.mxu0 0.0
    %112 = vmatpush.msra.mxu0 0.0
    %113 = vmatpush.msra.mxu0 0.0
    %114 = vmatpush.msra.mxu0 0.0
    %115 = vmatpush.msra.mxu0 0.0
    %116 = vmatpush.msra.mxu0 0.0
    %117 = vmatpush.msra.mxu0 0.0
    %118 = vmatpush.msra.mxu0 0.0
    %119 = vmatpush.msra.mxu0 0.0
    %120 = vmatpush.msra.mxu0 0.0
    %v121 = vand.u32 %v44, 4294901760
    %v122 = vsub.f32 %v44, %v121
    %123 = vmatpush.msra.mxu0 %v122
    %v124 = vand.u32 %v43, 4294901760
    %v125 = vsub.f32 %v43, %v124
    %126 = vmatpush.msra.mxu0 %v125
    %v127 = vand.u32 %v47, 4294901760
    %v128 = vsub.f32 %v47, %v127
    %129 = vmatmul.f32.gmra.mxu0 %v128
    %v130 = vpop.f32.mrf.mxu0
    %v131 = vadd.f32 %v105, %v130
    %132 = vdwg.mxu0
    %133 = vmatpush.msra.mxu0 0.0
    %134 = vmatpush.msra.mxu0 0.0
    %135 = vmatpush.msra.mxu0 0.0
    %136 = vmatpush.msra.mxu0 0.0
    %137 = vmatpush.msra.mxu0 0.0
    %138 = vmatpush.msra.mxu0 0.0
    %139 = vmatpush.msra.mxu0 0.0
    %140 = vmatpush.msra.mxu0 0.0
    %141 = vmatpush.msra.mxu0 0.0
    %142 = vmatpush.msra.mxu0 0.0
    %143 = vmatpush.msra.mxu0 0.0
    %144 = vmatpush.msra.mxu0 0.0
    %145 = vmatpush.msra.mxu0 0.0
    %146 = vmatpush.msra.mxu0 0.0
    %v147 = vand.u32 %v44, 4294901760
    %148 = vmatpush.msra.mxu0 %v147
    %v149 = vand.u32 %v43, 4294901760
    %150 = vmatpush.msra.mxu0 %v149
    %v151 = vand.u32 %v47, 4294901760
    %v152 = vsub.f32 %v47, %v151
    %v153 = vand.u32 %v152, 4294901760
    %154 = vmatmul.f32.gmra.mxu0 %v153
    %v155 = vpop.f32.mrf.mxu0
    %v156 = vadd.f32 %v131, %v155
    %157 = vdwg.mxu0
    %158 = vmatpush.msra.mxu0 0.0
    %159 = vmatpush.msra.mxu0 0.0
    %160 = vmatpush.msra.mxu0 0.0
    %161 = vmatpush.msra.mxu0 0.0
    %162 = vmatpush.msra.mxu0 0.0
    %163 = vmatpush.msra.mxu0 0.0
    %164 = vmatpush.msra.mxu0 0.0
    %165 = vmatpush.msra.mxu0 0.0
    %166 = vmatpush.msra.mxu0 0.0
    %167 = vmatpush.msra.mxu0 0.0
    %168 = vmatpush.msra.mxu0 0.0
    %169 = vmatpush.msra.mxu0 0.0
    %170 = vmatpush.msra.mxu0 0.0
    %171 = vmatpush.msra.mxu0 0.0
    %v172 = vand.u32 %v44, 4294901760
    %v173 = vsub.f32 %v44, %v172
    %v174 = vand.u32 %v173, 4294901760
    %175 = vmatpush.msra.mxu0 %v174
    %v176 = vand.u32 %v43, 4294901760
    %v177 = vsub.f32 %v43, %v176
    %v178 = vand.u32 %v177, 4294901760
    %179 = vmatpush.msra.mxu0 %v178
    %v180 = vand.u32 %v47, 4294901760
    %181 = vmatmul.f32.gmra.mxu0 %v180
    %v182 = vpop.f32.mrf.mxu0
    %v183 = vadd.f32 %v156, %v182
    %184 = vdwg.mxu0
    %185 = vmatpush.msra.mxu0 0.0
    %186 = vmatpush.msra.mxu0 0.0
    %187 = vmatpush.msra.mxu0 0.0
    %188 = vmatpush.msra.mxu0 0.0
    %189 = vmatpush.msra.mxu0 0.0
    %190 = vmatpush.msra.mxu0 0.0
    %191 = vmatpush.msra.mxu0 0.0
    %192 = vmatpush.msra.mxu0 0.0
    %193 = vmatpush.msra.mxu0 0.0
    %194 = vmatpush.msra.mxu0 0.0
    %195 = vmatpush.msra.mxu0 0.0
    %196 = vmatpush.msra.mxu0 0.0
    %197 = vmatpush.msra.mxu0 0.0
    %198 = vmatpush.msra.mxu0 0.0
    %v199 = vand.u32 %v44, 4294901760
    %200 = vmatpush.msra.mxu0 %v199
    %v201 = vand.u32 %v43, 4294901760
    %202 = vmatpush.msra.mxu0 %v201
    %v203 = vand.u32 %v47, 4294901760
    %204 = vmatmul.f32.gmra.mxu0 %v203
    %v205 = vpop.f32.mrf.mxu0
    %v206 = vadd.f32 %v183, %v205
    %207 = vdwg.mxu0
    %208 = vst [vmem:[#allocation7] sm:$0xf] %v206
    // Predicated region
    $region18: #{tpu_custom_call.1} parent=1 // pred_check
      _
    $region19: #{tpu_custom_call.1} parent=1 // pred_check_branch
      %210 = sbr.rel (0) target = $region21
    $region20: #{tpu_custom_call.1} parent=1 // pred_region
      %212 = vsyncadd [#allocation4], 0
      %s214 = sshll.u32 [#allocation7], 4
      %s215 = int_to_ptr.vmem [resolvable:$true] %s214
      %s216 = sshll.u32 %s2, 4
      %s217 = int_to_ptr.hbm [resolvable:$true] %s216
      %219 = dma.vmem_to_hbm [thread:$0]  %s215, 64, %s217, [#allocation4]
    $region21: #{tpu_custom_call.1} parent=1 // pred_fallthru
      _
    // Predicated region
    $region22: #{tpu_custom_call.1} parent=1 // pred_check
      _
    $region23: #{tpu_custom_call.1} parent=1 // pred_check_branch
      %221 = sbr.rel (0) target = $region25
    $region24: #{tpu_custom_call.1} parent=1 // pred_region
      %223 = dma.done [#allocation4], 64
    $region25: #{tpu_custom_call.1} parent=1 // pred_fallthru
      _
    %224 = vsyncpa [#allocation3], 1
    %225 = vsyncpa [#allocation6], 1
    %226 = vsyncpa [#allocation4], 1

</llo_original>
